<compile_context>
chip_gen: v5e
topology: v5e:2x2
jax: 0.10.0
libtpu: 0.0.40
codegen_flags: <defaults>
</compile_context>

<pallas_src>
import functools

import numpy as np
import jax
import jax.numpy as jnp
from jax.experimental import pallas as pl
from jax.experimental.pallas import tpu as pltpu


_MAX_BLOCK_L = 32768            # max lane-axis tile (elements)
_BLOCK_BYTES_BUDGET = 2 << 20   # ~2 MiB of f32 per input block


def _round_up(v, m):
    return ((v + m - 1) // m) * m


def _choose_tiles(B, L, max_block_l, block_bytes):
    # Reduction tile (last grid axis): full L if it fits one block, else the
    # smallest 128-aligned tile covering L in ceil(L / max_block_l) steps.
    if L <= max_block_l:
        bl, Lp = L, L
    else:
        k_steps = pl.cdiv(L, max_block_l)
        bl = _round_up(pl.cdiv(L, k_steps), 128)
        Lp = k_steps * bl
    # Batch tile: as many rows as fit the per-block byte budget (f32 elems),
    # 8-aligned; the full batch in a single tile if it is small enough.
    rows = max(8, ((block_bytes // (bl * 4)) // 8) * 8)
    if B <= rows:
        bb, Bp = B, B           # block == full dim is always legal
    else:
        bb = rows
        Bp = _round_up(B, bb)
    return bb, Bp, bl, Lp


def _position_prior_kernel(x_ref, o_ref, acc_ref, *, log_norm_const):
    k = pl.program_id(1)

    @pl.when(k == 0)
    def _init():
        acc_ref[...] = jnp.zeros_like(acc_ref)

    x = x_ref[...].astype(jnp.float32)     # in-VMEM upcast (bf16/f16 inputs OK)
    # VPU square + XLU cross-lane reduce (separate issue slots); tiny (bb, 1)
    # accumulator keeps VMEM traffic minimal.  HBM DMA dominates regardless.
    acc_ref[...] += jnp.sum(x * x, axis=-1, keepdims=True)

    @pl.when(k == pl.num_programs(1) - 1)
    def _finalize():
        res = -0.5 * acc_ref[...] + log_norm_const        # (bb, 1)
        o_ref[...] = jnp.broadcast_to(res, o_ref.shape)   # lane-dense store


def position_prior_log_likelihood(x, *, max_block_l=_MAX_BLOCK_L,
                                  block_bytes=_BLOCK_BYTES_BUDGET):
    """Pallas equivalent of PositionPrior().forward(x). x: (B, N, D) -> (B,) f32."""
    B, N, D = x.shape
    L = N * D
    dof = (N - 1) * D
    log_norm_const = float(-0.5 * dof * np.log(2.0 * np.pi))

    x2d = x.reshape(B, L)                  # pure reshape of contiguous array

    bb, Bp, bl, Lp = _choose_tiles(B, L, max_block_l, block_bytes)
    if (Bp != B) or (Lp != L):
        # Zero padding does not change sum(x**2); padded batch rows are dropped.
        x2d = jnp.pad(x2d, ((0, Bp - B), (0, Lp - L)))

    grid = (Bp // bb, Lp // bl)
    kernel = functools.partial(_position_prior_kernel,
                               log_norm_const=log_norm_const)

    out = pl.pallas_call(
        kernel,
        out_shape=jax.ShapeDtypeStruct((Bp, 128), jnp.float32),
        grid_spec=pltpu.PrefetchScalarGridSpec(
            num_scalar_prefetch=0,
            grid=grid,
            in_specs=[pl.BlockSpec((bb, bl), lambda i, k: (i, k))],
            out_specs=pl.BlockSpec((bb, 128), lambda i, k: (i, 0)),
            scratch_shapes=[pltpu.VMEM((bb, 1), jnp.float32)],
        ),
        compiler_params=pltpu.CompilerParams(
            dimension_semantics=("parallel", "arbitrary")),
        cost_estimate=pl.CostEstimate(
            flops=2 * B * L,
            transcendentals=0,
            bytes_accessed=B * L * x.dtype.itemsize + B * 4),
    )(x2d)
    return out[:B, 0]                      # (B,)


# TODO(synk): PositionPrior.sample() (CoG-projected Gaussian sampling) is not
# part of the forward pass and is omitted here.


if __name__ == "__main__":
    key = jax.random.PRNGKey(0)
    key_a, key_b = jax.random.split(key)

    def _ref(x):
        B, N, D = x.shape
        dof = (N - 1) * D
        xf = x.astype(jnp.float32)
        return (-0.5 * jnp.sum(xf * xf, axis=(1, 2))
                - 0.5 * dof * np.log(2.0 * np.pi))

    # Small case: whole problem in a single (B, L) block, no padding.
    B, N, D = 2, 8, 3
    x = jax.random.normal(key_a, (B, N, D), dtype=jnp.float32)
    x = x - jnp.mean(x, axis=1, keepdims=True)   # CoG-free (module asserts this)
    out = jax.block_until_ready(position_prior_log_likelihood(x))
    assert out.shape == (B,)
    np.testing.assert_allclose(np.asarray(out), np.asarray(_ref(x)),
                               rtol=1e-5, atol=1e-4)

    # Larger case: force batch + reduction tiling, accumulation and padding.
    B2, N2, D2 = 9, 100, 3
    x2 = jax.random.normal(key_b, (B2, N2, D2), dtype=jnp.float32)
    x2 = x2 - jnp.mean(x2, axis=1, keepdims=True)
    out2 = jax.block_until_ready(
        position_prior_log_likelihood(x2, max_block_l=128, block_bytes=4096))
    assert out2.shape == (B2,)
    np.testing.assert_allclose(np.asarray(out2), np.asarray(_ref(x2)),
                               rtol=1e-5, atol=1e-4)

    print("KERNEL_OK")
</pallas_src>

<mosaic_0001>
module attributes {stable_mosaic.version = 11 : i64} {
  func.func @_position_prior_kernel(%arg0: i32, %arg1: i32, %arg2: memref<2x24xf32, #tpu.memory_space<vmem>>, %arg3: memref<2x128xf32, #tpu.memory_space<vmem>>, %arg4: memref<2x1xf32, #tpu.memory_space<vmem>>) attributes {dimension_semantics = [#tpu.dimension_semantics<parallel>, #tpu.dimension_semantics<arbitrary>], iteration_bounds = array<i64: 1, 1>, scalar_prefetch = 0 : i64, scratch_operands = 1 : i64, tpu.core_type = #tpu.core_type<tc>, window_params = [{transform_indices = @transform_0, window_bounds = array<i64: 2, 24>}, {transform_indices = @transform_1, window_bounds = array<i64: 2, 128>}]} {
    %c0_i32 = arith.constant 0 : i32
    %0 = arith.cmpi eq, %arg1, %c0_i32 : i32
    %1 = arith.extui %0 : i1 to i32
    %c0_i32_0 = arith.constant 0 : i32
    %2 = arith.cmpi ne, %1, %c0_i32_0 : i32
    scf.if %2 {
      %cst_8 = arith.constant 0.000000e+00 : f32
      %13 = vector.broadcast %cst_8 : f32 to vector<2x1xf32>
      %c0_9 = arith.constant 0 : index
      %c0_10 = arith.constant 0 : index
      %14 = vector.load %arg4[%c0_9, %c0_10] : memref<2x1xf32, #tpu.memory_space<vmem>>, vector<2x1xf32>
      tpu.vector_store %arg4[%c0_9, %c0_10], %13 {strides = array<i32>} : memref<2x1xf32, #tpu.memory_space<vmem>>, vector<2x1xf32>,
    } else {
    }
    %c0 = arith.constant 0 : index
    %c0_1 = arith.constant 0 : index
    %3 = vector.load %arg2[%c0, %c0_1] : memref<2x24xf32, #tpu.memory_space<vmem>>, vector<2x24xf32>
    %c0_2 = arith.constant 0 : index
    %c0_3 = arith.constant 0 : index
    %4 = vector.load %arg4[%c0_2, %c0_3] : memref<2x1xf32, #tpu.memory_space<vmem>>, vector<2x1xf32>
    %5 = arith.mulf %3, %3 : vector<2x24xf32>
    %cst = arith.constant dense<0.000000e+00> : vector<2xf32>
    %6 = vector.multi_reduction <add>, %5, %cst [1] : vector<2x24xf32> to vector<2xf32>
    %7 = vector.shape_cast %6 : vector<2xf32> to vector<2x1xf32>
    %8 = arith.addf %4, %7 : vector<2x1xf32>
    %c0_4 = arith.constant 0 : index
    %c0_5 = arith.constant 0 : index
    %9 = vector.load %arg4[%c0_4, %c0_5] : memref<2x1xf32, #tpu.memory_space<vmem>>, vector<2x1xf32>
    tpu.vector_store %arg4[%c0_4, %c0_5], %8 {strides = array<i32>} : memref<2x1xf32, #tpu.memory_space<vmem>>, vector<2x1xf32>,
    %c0_i32_6 = arith.constant 0 : i32
    %10 = arith.cmpi eq, %arg1, %c0_i32_6 : i32
    %11 = arith.extui %10 : i1 to i32
    %c0_i32_7 = arith.constant 0 : i32
    %12 = arith.cmpi ne, %11, %c0_i32_7 : i32
    scf.if %12 {
      %c0_8 = arith.constant 0 : index
      %c0_9 = arith.constant 0 : index
      %13 = vector.load %arg4[%c0_8, %c0_9] : memref<2x1xf32, #tpu.memory_space<vmem>>, vector<2x1xf32>
      %cst_10 = arith.constant -5.000000e-01 : f32
      %14 = vector.broadcast %cst_10 : f32 to vector<2x1xf32>
      %15 = arith.mulf %14, %13 : vector<2x1xf32>
      %cst_11 = arith.constant -19.2977085 : f32
      %16 = vector.broadcast %cst_11 : f32 to vector<2x1xf32>
      %17 = arith.addf %15, %16 : vector<2x1xf32>
      %18 = vector.shape_cast %17 : vector<2x1xf32> to vector<2x1xf32>
      %19 = vector.broadcast %18 : vector<2x1xf32> to vector<2x128xf32>
      %c0_12 = arith.constant 0 : index
      %c0_13 = arith.constant 0 : index
      %20 = vector.load %arg3[%c0_12, %c0_13] : memref<2x128xf32, #tpu.memory_space<vmem>>, vector<2x128xf32>
      tpu.vector_store %arg3[%c0_12, %c0_13], %19 {strides = array<i32>} : memref<2x128xf32, #tpu.memory_space<vmem>>, vector<2x128xf32>,
    } else {
    }
    return
  }
  func.func @transform_0(%arg0: i32, %arg1: i32) -> (i32, i32) {
    %c0_i32 = arith.constant 0 : i32
    return %arg0, %arg1 : i32, i32
  }
  func.func @transform_1(%arg0: i32, %arg1: i32) -> (i32, i32) {
    %c0_i32 = arith.constant 0 : i32
    %c0_i32_0 = arith.constant 0 : i32
    return %arg0, %c0_i32 : i32, i32
  }
}

</mosaic_0001>

<llo_original>
// kernel: tpu_custom_call.1
$region0: #{tpu_custom_call.1}
  #allocation0 [shape = 'u32[]', space=smem, size = 0x4, offset = 0x4, fixed_abs, tag = 'smem constant byte address 0x4 - core index']
  #allocation1 [shape = 'u32[72,128]{1,0:T(1,128)}', space=vmem, size = 0x9000, scoped, tag = 'internal scratch']
  #allocation2 [shape = 'f32[2,1]{1,0:T(2,128)}', space=vmem, size = 0x400, scoped, tag = 'scratch operand']
  %s0 = inlined_call_operand.hbm [shape: f32[2,24], index: 0, kind: input, shape index: {}]
  %s1 = inlined_call_operand.hbm [shape: f32[2,128], index: 1, kind: output, shape index: {}]
  %s2 = sld [smem:[#allocation0]]
  $region26: #{tpu_custom_call.1} parent=0
    _
  %s4 = ssub.s32 1, %s2
  %s5 = scalar_select 0, %s4, %s2
  $region1: #{tpu_custom_call.1} parent=0
    #allocation3 [shape = 'u8[1024]{0}', space=vmem, size = 0x400, scoped, tag = 'input window, operand 0, single buffered']
    #allocation4 [shape = 's32[1]{0}', space=sflag, size = 0x4, scoped, tag = 'scoped memory for tpu_custom_call.1']
    #allocation5 [shape = 's32[1]{0}', space=sflag, size = 0x4, scoped, tag = 'scoped memory for tpu_custom_call.1']
    #allocation6 [shape = 'u8[1024]{0}', space=vmem, size = 0x400, scoped, tag = 'output window, operand 0, single buffered']
    %6 = vsyncpa [#allocation4], 0
    %7 = vsyncpa [#allocation5], 0
    // Predicated region
    $region2: #{tpu_custom_call.1} parent=1 // pred_check
      _
    $region3: #{tpu_custom_call.1} parent=1 // pred_check_branch
      %9 = sbr.rel (0) target = $region5
    $region4: #{tpu_custom_call.1} parent=1 // pred_region
      %11 = vsyncadd [#allocation4], 0
      %s13 = sshll.u32 %s0, 4
      %s14 = int_to_ptr.hbm [resolvable:$true] %s13
      %s15 = sshll.u32 [#allocation3], 4
      %s16 = int_to_ptr.vmem [resolvable:$true] %s15
      %18 = dma.hbm_to_vmem [thread:$0]  %s14, 32, %s16, [#allocation4]
    $region5: #{tpu_custom_call.1} parent=1 // pred_fallthru
      _
    // Predicated region
    $region6: #{tpu_custom_call.1} parent=1 // pred_check
      _
    $region7: #{tpu_custom_call.1} parent=1 // pred_check_branch
      %20 = sbr.rel (0) target = $region9
    $region8: #{tpu_custom_call.1} parent=1 // pred_region
      %22 = dma.done [#allocation4], 32
    $region9: #{tpu_custom_call.1} parent=1 // pred_fallthru
      _
    %p23 = scmp.eq.s32.totalorder 0, 0
    // Predicated region
    $region10: #{tpu_custom_call.1} parent=1 // pred_check
      %p24 = pneg %p23
    $region11: #{tpu_custom_call.1} parent=1 // pred_check_branch
      %26 = sbr.rel (%p24) target = $region13
    $region12: #{tpu_custom_call.1} parent=1 // pred_region
      %vm27 = vcmask 1024
      %28 = vst.msk [vmem:[#allocation2] sm:$0x3] %vm27, 0.0
    $region13: #{tpu_custom_call.1} parent=1 // pred_fallthru
      _
    %v29 = vld [vmem:[#allocation3] sm:$0x3]
    %v30 = vld [vmem:[#allocation2] sm:$0x3]
    %v31 = vmul.f32 %v29, %v29
    %vm32 = vcmask 189440
    %v33 = vsel %vm32, %v31, 0.0
    %34 = vadd.xlane.f32.xlu0 %v33
    %v35 = vpop.xlane.xlu0 %34
    %v36 = vadd.f32 %v30, %v35
    %vm37 = vcmask 1024
    %38 = vst.msk [vmem:[#allocation2] sm:$0x3] %vm37, %v36
    // Predicated region
    $region14: #{tpu_custom_call.1} parent=1 // pred_check
      %p39 = pneg %p23
    $region15: #{tpu_custom_call.1} parent=1 // pred_check_branch
      %41 = sbr.rel (%p39) target = $region17
    $region16: #{tpu_custom_call.1} parent=1 // pred_region
      %v42 = vld [vmem:[#allocation2] sm:$0x3]
      %v43 = vmul.f32 %v42, -0.5
      %v44 = vadd.f32 %v43, -19.297709
      %46 = vset.pattern.permute.xlu0 0
      %47 = vperm.xlu0 %46, %v44
      %v48 = vpop.permute.xlu0 %47
      %50 = vst [vmem:[#allocation6] sm:$0x3] %v48
    $region17: #{tpu_custom_call.1} parent=1 // pred_fallthru
      _
    // Predicated region
    $region18: #{tpu_custom_call.1} parent=1 // pred_check
      _
    $region19: #{tpu_custom_call.1} parent=1 // pred_check_branch
      %52 = sbr.rel (0) target = $region21
    $region20: #{tpu_custom_call.1} parent=1 // pred_region
      %54 = vsyncadd [#allocation5], 0
      %s56 = sshll.u32 [#allocation6], 4
      %s57 = int_to_ptr.vmem [resolvable:$true] %s56
      %s58 = sshll.u32 %s1, 4
      %s59 = int_to_ptr.hbm [resolvable:$true] %s58
      %61 = dma.vmem_to_hbm [thread:$0]  %s57, 32, %s59, [#allocation5]
    $region21: #{tpu_custom_call.1} parent=1 // pred_fallthru
      _
    // Predicated region
    $region22: #{tpu_custom_call.1} parent=1 // pred_check
      _
    $region23: #{tpu_custom_call.1} parent=1 // pred_check_branch
      %63 = sbr.rel (0) target = $region25
    $region24: #{tpu_custom_call.1} parent=1 // pred_region
      %65 = dma.done [#allocation5], 32
    $region25: #{tpu_custom_call.1} parent=1 // pred_fallthru
      _
    %66 = vsyncpa [#allocation4], 1
    %67 = vsyncpa [#allocation5], 1

</llo_original>
